<compile_context>
chip_gen: v7x
topology: tpu7x:2x2x1
jax: 0.10.0
libtpu: 0.0.40
codegen_flags: <defaults>
</compile_context>

<pallas_src>
import functools
import math

import jax
import jax.numpy as jnp
from jax.experimental import pallas as pl
from jax.experimental.pallas import tpu as pltpu


def make_pe_table(max_len: int, d_model: int, dtype=jnp.float32) -> jax.Array:
    """Positional-encoding buffer [max_len, d_model] (torch buffer minus the
    singleton batch dim).  Build once, in the activation dtype."""
    position = jnp.arange(max_len, dtype=jnp.float32)[:, None]            # [L, 1]
    div_term = jnp.exp(jnp.arange(d_model, dtype=jnp.float32)
                       * (-math.log(10000.0) / d_model))                  # [D]
    angles = position * div_term                                          # [L, D]
    pe = jnp.sin(angles) + jnp.cos(angles)    # torch: pe += sin; pe += cos
    return pe.astype(dtype)


def _bcast_pe(pe, batch, dtype):
    """(ts, D) -> (ts, B*D): replicate pe across batch lanes in VMEM.

    Minor-dim concatenate rides idle XLU/VPU slots of this mem-bound kernel
    instead of pre-tiling pe in HBM (which would B-x the pe HBM stream)."""
    pe = pe.astype(dtype)
    if batch == 1:
        return pe
    return jnp.concatenate([pe] * batch, axis=-1)


def _add_pe_kernel(x_ref, pe_ref, o_ref, *, batch):
    x = x_ref[...]
    o_ref[...] = (x + _bcast_pe(pe_ref[...], batch, x.dtype)).astype(o_ref.dtype)


def _add_pe_dropout_kernel(seed_ref, x_ref, pe_ref, o_ref, *,
                           batch, block_rows, keep_thresh, scale):
    x = x_ref[...]
    y = x + _bcast_pe(pe_ref[...], batch, x.dtype)

    # Counter-based PRNG: hash(global element index ^ seed).  Grid-invariant,
    # pure integer VPU work (no pltpu.prng_*, which lacks interpret lowering).
    shape = y.shape
    row0 = pl.program_id(0) * block_rows
    r = jax.lax.broadcasted_iota(jnp.int32, shape, 0) + row0
    c = jax.lax.broadcasted_iota(jnp.int32, shape, 1)
    mix = (r * shape[1] + c) ^ seed_ref[0]
    h = jax.lax.bitcast_convert_type(mix, jnp.uint32)
    h = (h ^ (h >> 16)) * jnp.uint32(0x7FEB352D)   # murmur/lowbias32 finalizer
    h = (h ^ (h >> 15)) * jnp.uint32(0x846CA68B)
    h = h ^ (h >> 16)

    keep = h >= jnp.uint32(keep_thresh)            # P(keep) = 1 - p
    y = jnp.where(keep, y * jnp.asarray(scale, y.dtype), jnp.zeros_like(y))
    o_ref[...] = y.astype(o_ref.dtype)


def _choose_block_rows(S, row_bytes, itemsize, requested=None):
    """S-tile: multiple of the dtype's packed sublane count (8/16/32),
    ~2 MiB per array (fits v5e's 16 MiB scoped-VMEM default with double
    buffering), and >= 2 grid steps on big slabs so v7x's two TensorCores
    both participate via dimension_semantics=("parallel",)."""
    sub = {4: 8, 2: 16, 1: 32}.get(itemsize, 8)
    if requested is not None:
        ts = max(1, min(int(requested), S))
    else:
        target_bytes = 2 * 1024 * 1024
        ts = max(sub, target_bytes // max(row_bytes, 1))
        if S * row_bytes >= 4 * 1024 * 1024:        # keep >= 2 steps (v7x megacore)
            half = -(-S // 2)
            half = -(-half // sub) * sub
            ts = min(ts, half)
    if ts >= S:
        return S                                    # full-extent block always legal
    return max(sub, (ts // sub) * sub)


def positional_encoding(x, pe, pos: int = 0, *,
                        dropout_p: float = 0.1,
                        training: bool = False,
                        seed: int = 0,
                        block_rows=None):
    """x: [S, B, D]; pe: [max_len, D] from make_pe_table(..., dtype=x.dtype).

    Returns dropout(x + pe[pos:pos+S], p) with the shape/dtype of x.
    """
    S, B, D = x.shape
    N = B * D
    max_len = pe.shape[0]
    assert pe.ndim == 2 and pe.shape[1] == D, "pe must be [max_len, d_model]"
    assert 0 <= pos and pos + S <= max_len, "pe table too short for pos + seq_len"

    if training and dropout_p >= 1.0:               # torch: everything dropped
        return jnp.zeros_like(x)

    if pe.dtype != x.dtype:                         # prefer building in x.dtype
        pe = pe.astype(x.dtype)

    x2 = x.reshape(S, N)                            # lane-dense when B*D % 128 == 0
    itemsize = x.dtype.itemsize
    ts = _choose_block_rows(S, N * itemsize, itemsize, block_rows)
    grid = (pl.cdiv(S, ts),)

    # pe row window: fold the static `pos` into the index_map when block
    # aligned (no extra XLA slice); otherwise slice only the small [S, D]
    # slab (1/B of an x stream).
    if pos % ts == 0 and ts % 8 == 0 and pos + grid[0] * ts <= max_len:
        pe_arr = pe
        pos_blk = pos // ts
        pe_index_map = lambda i: (pos_blk + i, 0)
    else:
        pe_arr = pe[pos:pos + S]
        pe_index_map = lambda i: (i, 0)

    out_shape = jax.ShapeDtypeStruct((S, N), x.dtype)
    x_spec = pl.BlockSpec((ts, N), lambda i: (i, 0))
    pe_spec = pl.BlockSpec((ts, D), pe_index_map)
    o_spec = pl.BlockSpec((ts, N), lambda i: (i, 0))
    cparams = pltpu.CompilerParams(dimension_semantics=("parallel",))
    cost = pl.CostEstimate(flops=2 * S * N, transcendentals=0,
                           bytes_accessed=(2 * S * N + S * D) * itemsize)

    if (not training) or dropout_p <= 0.0:
        out2 = pl.pallas_call(
            functools.partial(_add_pe_kernel, batch=B),
            out_shape=out_shape,
            grid=grid,
            in_specs=[x_spec, pe_spec],
            out_specs=o_spec,
            compiler_params=cparams,
            cost_estimate=cost,
        )(x2, pe_arr)
        return out2.reshape(S, B, D)

    # Training path: inverted dropout via the in-kernel counter-hash PRNG.
    # TODO(synk): random stream cannot bitwise-match torch's RNG; keep/scale
    # semantics (P(keep)=1-p, kept values scaled by 1/(1-p)) are preserved.
    keep_thresh = min(int(round(dropout_p * 4294967296.0)), 4294967295)
    scale = 1.0 / (1.0 - dropout_p)
    seed_mixed = (int(seed) * 0x9E3779B1) & 0xFFFFFFFF   # host-side seed avalanche
    if seed_mixed >= (1 << 31):
        seed_mixed -= (1 << 32)
    seed_arr = jnp.asarray([seed_mixed], dtype=jnp.int32)

    kernel = functools.partial(_add_pe_dropout_kernel, batch=B, block_rows=ts,
                               keep_thresh=keep_thresh, scale=scale)
    out2 = pl.pallas_call(
        kernel,
        out_shape=out_shape,
        grid=grid,
        in_specs=[pl.BlockSpec(memory_space=pltpu.MemorySpace.SMEM),  # seed scalar
                  x_spec, pe_spec],
        out_specs=o_spec,
        compiler_params=cparams,
        cost_estimate=cost,
    )(seed_arr, x2, pe_arr)
    return out2.reshape(S, B, D)


if __name__ == "__main__":
    key = jax.random.PRNGKey(0)
    k1, k2 = jax.random.split(key)

    # ---- Test 1: small eval forward, pos not block-aligned (slice fallback) ----
    S, B, D, max_len, pos = 8, 4, 32, 64, 3
    x = jax.random.normal(k1, (S, B, D), dtype=jnp.float32)
    pe = make_pe_table(max_len, D, dtype=x.dtype)            # [max_len, D]

    out = jax.block_until_ready(
        positional_encoding(x, pe, pos=pos, dropout_p=0.1, training=False))
    ref = x + pe[pos:pos + S][:, None, :]
    assert out.shape == x.shape and out.dtype == x.dtype
    assert jnp.allclose(out, ref, atol=1e-6, rtol=1e-6), "eval-mode mismatch"

    # ---- Test 2: multi-tile grid, pos=0 folded into pe's index_map ----
    S2, max_len2 = 256, 512
    x_big = jax.random.normal(k2, (S2, B, D), dtype=jnp.float32)
    pe2 = make_pe_table(max_len2, D, dtype=x_big.dtype)
    out2 = jax.block_until_ready(
        positional_encoding(x_big, pe2, pos=0, training=False, block_rows=64))
    ref2 = x_big + pe2[0:S2][:, None, :]
    assert jnp.allclose(out2, ref2, atol=1e-6, rtol=1e-6), "folded-pos mismatch"

    # unaligned pos + ragged last block (slice fallback path)
    out2b = jax.block_until_ready(
        positional_encoding(x_big, pe2, pos=7, training=False, block_rows=48))
    ref2b = x_big + pe2[7:7 + S2][:, None, :]
    assert jnp.allclose(out2b, ref2b, atol=1e-6, rtol=1e-6), "ragged-tile mismatch"

    # ---- Test 3: training-mode dropout (in-kernel hash PRNG, mask property) ----
    p = 0.1
    out_tr = jax.block_until_ready(
        positional_encoding(x, pe, pos=pos, dropout_p=p, training=True, seed=42))
    ref_scaled = ref * jnp.float32(1.0 / (1.0 - p))
    is_zero = jnp.isclose(out_tr, 0.0, atol=1e-6)
    is_kept = jnp.isclose(out_tr, ref_scaled, atol=1e-5, rtol=1e-5)
    assert out_tr.shape == x.shape and out_tr.dtype == x.dtype
    assert bool(jnp.all(is_zero | is_kept)), "dropout output is not {0, scaled(x+pe)}"

    print("KERNEL_OK")
</pallas_src>

<mosaic_0001>
module attributes {stable_mosaic.version = 11 : i64} {
  func.func @_add_pe_kernel(%arg0: i32, %arg1: memref<8x128xf32, #tpu.memory_space<vmem>>, %arg2: memref<8x32xf32, #tpu.memory_space<vmem>>, %arg3: memref<8x128xf32, #tpu.memory_space<vmem>>) attributes {dimension_semantics = [#tpu.dimension_semantics<parallel>], iteration_bounds = array<i64: 1>, scalar_prefetch = 0 : i64, scratch_operands = 0 : i64, tpu.core_type = #tpu.core_type<tc>, window_params = [{transform_indices = @transform_0, window_bounds = array<i64: 8, 128>}, {transform_indices = @transform_1, window_bounds = array<i64: 8, 32>}, {transform_indices = @transform_2, window_bounds = array<i64: 8, 128>}]} {
    %c0 = arith.constant 0 : index
    %c0_0 = arith.constant 0 : index
    %0 = vector.load %arg1[%c0, %c0_0] : memref<8x128xf32, #tpu.memory_space<vmem>>, vector<8x128xf32>
    %c0_1 = arith.constant 0 : index
    %c0_2 = arith.constant 0 : index
    %1 = vector.load %arg2[%c0_1, %c0_2] : memref<8x32xf32, #tpu.memory_space<vmem>>, vector<8x32xf32>
    %2 = tpu.concatenate %1, %1, %1, %1 in 1 : vector<8x32xf32>, vector<8x32xf32>, vector<8x32xf32>, vector<8x32xf32> -> vector<8x128xf32>
    %3 = arith.addf %0, %2 : vector<8x128xf32>
    %c0_3 = arith.constant 0 : index
    %c0_4 = arith.constant 0 : index
    %4 = vector.load %arg3[%c0_3, %c0_4] : memref<8x128xf32, #tpu.memory_space<vmem>>, vector<8x128xf32>
    tpu.vector_store %arg3[%c0_3, %c0_4], %3 {strides = array<i32>} : memref<8x128xf32, #tpu.memory_space<vmem>>, vector<8x128xf32>,
    return
  }
  func.func @transform_0(%arg0: i32) -> (i32, i32) {
    %c0_i32 = arith.constant 0 : i32
    %c0_i32_0 = arith.constant 0 : i32
    return %arg0, %c0_i32 : i32, i32
  }
  func.func @transform_1(%arg0: i32) -> (i32, i32) {
    %c0_i32 = arith.constant 0 : i32
    %c0_i32_0 = arith.constant 0 : i32
    return %arg0, %c0_i32 : i32, i32
  }
  func.func @transform_2(%arg0: i32) -> (i32, i32) {
    %c0_i32 = arith.constant 0 : i32
    %c0_i32_0 = arith.constant 0 : i32
    return %arg0, %c0_i32 : i32, i32
  }
}

</mosaic_0001>

<llo_original>
// kernel: tpu_custom_call.1
$region0: #{tpu_custom_call.1}
  #allocation0 [shape = 'u32[]', space=smem, size = 0x4, offset = 0x4, fixed_abs, tag = 'smem constant byte address 0x4 - core index']
  #allocation1 [shape = 'u32[144,128]{1,0:T(1,128)}', space=vmem, size = 0x12000, scoped, tag = 'internal scratch']
  %s0 = inlined_call_operand.hbm [shape: f32[8,128], index: 0, kind: input, shape index: {}]
  %s1 = inlined_call_operand.hbm [shape: f32[8,32], index: 1, kind: input, shape index: {}]
  %s2 = inlined_call_operand.hbm [shape: f32[8,128], index: 2, kind: output, shape index: {}]
  %s3 = sld [smem:[#allocation0]]
  $region26: #{tpu_custom_call.1} parent=0
    _
  %s5 = ssub.s32 1, %s3
  %s6 = scalar_select 0, %s5, %s3
  $region1: #{tpu_custom_call.1} parent=0
    #allocation2 [shape = 'u8[4096]{0}', space=vmem, size = 0x1000, scoped, tag = 'input window, operand 0, single buffered']
    #allocation3 [shape = 's32[1]{0}', space=sflag, size = 0x4, scoped, tag = 'scoped memory for tpu_custom_call.1']
    #allocation4 [shape = 's32[1]{0}', space=sflag, size = 0x4, scoped, tag = 'scoped memory for tpu_custom_call.1']
    #allocation5 [shape = 'u8[4096]{0}', space=vmem, size = 0x1000, scoped, tag = 'input window, operand 1, single buffered']
    #allocation6 [shape = 's32[1]{0}', space=sflag, size = 0x4, scoped, tag = 'scoped memory for tpu_custom_call.1']
    #allocation7 [shape = 'u8[4096]{0}', space=vmem, size = 0x1000, scoped, tag = 'output window, operand 0, single buffered']
    %7 = vsyncpa [#allocation3], 0
    %8 = vsyncpa [#allocation6], 0
    %9 = vsyncpa [#allocation4], 0
    // Predicated region
    $region2: #{tpu_custom_call.1} parent=1 // pred_check
      _
    $region3: #{tpu_custom_call.1} parent=1 // pred_check_branch
      %11 = sbr.rel (0) target = $region5
    $region4: #{tpu_custom_call.1} parent=1 // pred_region
      %s13 = ssub.s32 128, 128
      %14 = vsyncadd [#allocation3], %s13
      %s16 = sshll.u32 [#allocation2], 4
      %s17 = int_to_ptr.vmem [resolvable:$true] %s16
      %19 = dma.hbm_to_vmem [thread:$0]  %s0, 128, %s17, [#allocation3]
    $region5: #{tpu_custom_call.1} parent=1 // pred_fallthru
      _
    // Predicated region
    $region6: #{tpu_custom_call.1} parent=1 // pred_check
      _
    $region7: #{tpu_custom_call.1} parent=1 // pred_check_branch
      %21 = sbr.rel (0) target = $region9
    $region8: #{tpu_custom_call.1} parent=1 // pred_region
      %s23 = ssub.s32 128, 128
      %24 = vsyncadd [#allocation6], %s23
      %s26 = sshll.u32 [#allocation5], 4
      %s27 = int_to_ptr.vmem [resolvable:$true] %s26
      %29 = dma.hbm_to_vmem [thread:$0]  %s1, 128, %s27, [#allocation6]
    $region9: #{tpu_custom_call.1} parent=1 // pred_fallthru
      _
    // Predicated region
    $region10: #{tpu_custom_call.1} parent=1 // pred_check
      _
    $region11: #{tpu_custom_call.1} parent=1 // pred_check_branch
      %31 = sbr.rel (0) target = $region13
    $region12: #{tpu_custom_call.1} parent=1 // pred_region
      %32 = dma.done [#allocation3], 128
    $region13: #{tpu_custom_call.1} parent=1 // pred_fallthru
      _
    // Predicated region
    $region14: #{tpu_custom_call.1} parent=1 // pred_check
      _
    $region15: #{tpu_custom_call.1} parent=1 // pred_check_branch
      %34 = sbr.rel (0) target = $region17
    $region16: #{tpu_custom_call.1} parent=1 // pred_region
      %35 = dma.done [#allocation6], 128
    $region17: #{tpu_custom_call.1} parent=1 // pred_fallthru
      _
    %v36 = vld [vmem:[#allocation2] sm:$0xff]
    %v37 = vld [vmem:[#allocation5] sm:$0xff]
    %39 = vrot.lane.b32.xlu0 %v37, 32
    %v40 = vpop.permute.xlu0 %39
    %42 = vrot.lane.b32.xlu0 %v37, 64
    %v43 = vpop.permute.xlu0 %42
    %45 = vrot.lane.b32.xlu0 %v37, 96
    %v46 = vpop.permute.xlu0 %45
    %vm48 = vcmask 261120
    %v49 = vsel %vm48, %v37, %v40
    %vm50 = vcmask 523264
    %v51 = vsel %vm50, %v49, %v43
    %vm52 = vcmask 785408
    %v53 = vsel %vm52, %v51, %v46
    %v54 = vadd.f32 %v36, %v53
    %55 = vst [vmem:[#allocation7] sm:$0xff] %v54
    // Predicated region
    $region18: #{tpu_custom_call.1} parent=1 // pred_check
      _
    $region19: #{tpu_custom_call.1} parent=1 // pred_check_branch
      %57 = sbr.rel (0) target = $region21
    $region20: #{tpu_custom_call.1} parent=1 // pred_region
      %s59 = ssub.s32 128, 128
      %60 = vsyncadd [#allocation4], %s59
      %s62 = sshll.u32 [#allocation7], 4
      %s63 = int_to_ptr.vmem [resolvable:$true] %s62
      %65 = dma.vmem_to_hbm [thread:$0]  %s63, 128, %s2, [#allocation4]
    $region21: #{tpu_custom_call.1} parent=1 // pred_fallthru
      _
    // Predicated region
    $region22: #{tpu_custom_call.1} parent=1 // pred_check
      _
    $region23: #{tpu_custom_call.1} parent=1 // pred_check_branch
      %67 = sbr.rel (0) target = $region25
    $region24: #{tpu_custom_call.1} parent=1 // pred_region
      %68 = dma.done [#allocation4], 128
    $region25: #{tpu_custom_call.1} parent=1 // pred_fallthru
      _
    %69 = vsyncpa [#allocation3], 1
    %70 = vsyncpa [#allocation6], 1
    %71 = vsyncpa [#allocation4], 1

</llo_original>
